<compile_context>
chip_gen: v5e
topology: v5e:2x2
jax: 0.10.0
libtpu: 0.0.40
codegen_flags: <defaults>
</compile_context>

<pallas_src>
import functools

import jax
import jax.numpy as jnp
from jax.experimental import pallas as pl
from jax.experimental.pallas import tpu as pltpu


def _layernorm_kernel(x_ref, g_ref, o_ref, *, eps, act):
    # x_ref: (Bt, C, TILE_S), g_ref: (1, C, 1), o_ref: (Bt, C, TILE_S)
    x = x_ref[...].astype(jnp.float32)
    # torch.mean(x, dim=1) / torch.var(x, dim=1, unbiased=False)
    mean = jnp.mean(x, axis=1, keepdims=True)
    centered = x - mean
    var = jnp.mean(centered * centered, axis=1, keepdims=True)
    y = centered * jax.lax.rsqrt(var + eps) * g_ref[...].astype(jnp.float32)
    if act is not None:
        y = act(y)  # fused elementwise epilogue (free: VPU/EUP slack)
    o_ref[...] = y.astype(o_ref.dtype)


def _round_up(x, m):
    return -(-x // m) * m


def _vmem_capacity_bytes():
    try:
        return int(pltpu.get_tpu_info().vmem_capacity_bytes)
    except Exception:
        return 64 * 1024 * 1024  # conservative fallback (v7x per-TC size)


def _choose_tiling(B, C, S, itemsize, buffer_budget_bytes):
    """Pick (Bt, tile_s) so 2-in + 2-out double buffers fit the VMEM budget."""
    if S <= 128:
        # Full-extent last dim is always a legal block, no padding needed.
        tile_s = S
    else:
        # live bytes ~= 4 * Bt * C * tile_s * itemsize (gamma is negligible)
        per_lane_bytes = 4 * max(C, 1) * itemsize
        tile_s = (buffer_budget_bytes // per_lane_bytes) // 128 * 128
        tile_s = int(max(128, min(tile_s, 8192, _round_up(S, 128))))
    n_s = -(-S // tile_s)

    # If one tile already covers S, pack several batch rows per block so each
    # grid step still moves a big lane-dense slab.
    Bt = 1
    if n_s == 1 and B > 1:
        max_bt = max(1, buffer_budget_bytes // (4 * max(C, 1) * tile_s * itemsize))
        Bt = min(B, int(max_bt))
        # keep Bt a divisor of B and keep >= 2 grid steps (v7x: 2 TensorCores)
        while Bt > 1 and (B % Bt != 0 or (B // Bt) * n_s < 2):
            Bt -= 1

    # If the grid collapsed to a single step, split S in two when possible so
    # both cores (and the pipeline) have something to do.
    if (B // Bt) * n_s < 2 and S > 256 and tile_s > 128:
        tile_s = int(max(128, _round_up(-(-S // 2), 128)))
    return Bt, tile_s


def layernorm(x, gamma, *, eps=1e-5, act=None, tile_s=None):
    """LayerNorm.forward: (x - mean_C) / sqrt(var_C + eps) * gamma, optionally
    followed by a fused elementwise `act`.

    x:     (B, C, D, H, W)  float32 or bfloat16 (kept at its dtype end-to-end)
    gamma: (1, C, 1, 1, 1)  scale parameter (PyTorch init = ones)
    """
    B, C, D, H, W = x.shape
    S = D * H * W
    x3 = x.reshape(B, C, S)          # free: contiguous NCDHW -> (B, C, S)
    g3 = gamma.reshape(1, C, 1)

    itemsize = jnp.dtype(x.dtype).itemsize
    phys = _vmem_capacity_bytes()
    # ~45% of physical VMEM for the pipelined buffers, explicit scoped limit
    # with headroom (v5e/v6e: ~57 MiB buffers / 96 MiB limit; v7x: ~28 / 48).
    buffer_budget = min(phys * 9 // 20, 64 * 1024 * 1024)
    vmem_limit = min(phys * 3 // 4, 100 * 1024 * 1024)

    if tile_s is None:
        Bt, tile_s = _choose_tiling(B, C, S, itemsize, buffer_budget)
    else:
        Bt = 1
        tile_s = S if S <= 128 else max(128, (int(tile_s) // 128) * 128)

    grid = (B // Bt, pl.cdiv(S, tile_s))
    kernel = functools.partial(_layernorm_kernel, eps=eps, act=act)

    y3 = pl.pallas_call(
        kernel,
        out_shape=jax.ShapeDtypeStruct((B, C, S), x.dtype),
        grid_spec=pltpu.PrefetchScalarGridSpec(
            num_scalar_prefetch=0,
            grid=grid,
            in_specs=[
                pl.BlockSpec((Bt, C, tile_s), lambda b, s: (b, 0, s)),
                pl.BlockSpec((1, C, 1), lambda b, s: (0, 0, 0)),
            ],
            out_specs=pl.BlockSpec((Bt, C, tile_s), lambda b, s: (b, 0, s)),
        ),
        compiler_params=pltpu.CompilerParams(
            dimension_semantics=("parallel", "parallel"),
            vmem_limit_bytes=int(vmem_limit),
        ),
    )(x3, g3)

    return y3.reshape(B, C, D, H, W)


if __name__ == "__main__":
    key = jax.random.PRNGKey(0)
    B, C, D, H, W = 2, 4, 8, 8, 8
    x = jax.random.normal(key, (B, C, D, H, W), dtype=jnp.float32)
    # nn.Parameter(torch.ones(1, dim, 1, 1, 1))
    gamma = jnp.ones((1, C, 1, 1, 1), dtype=jnp.float32)

    out = jax.block_until_ready(layernorm(x, gamma))

    # Pure-JAX reference (torch.var unbiased=False == jnp.var default ddof=0)
    mean = jnp.mean(x, axis=1, keepdims=True)
    var = jnp.var(x, axis=1, keepdims=True)
    ref = (x - mean) / jnp.sqrt(var + 1e-5) * gamma
    assert out.shape == (B, C, D, H, W)
    assert jnp.allclose(out, ref, atol=1e-5, rtol=1e-5), "f32 mismatch vs reference"

    # bf16 I/O path: halves HBM bytes for this mem-bound kernel; accumulation
    # stays f32 inside the kernel.
    x16 = x.astype(jnp.bfloat16)
    out16 = jax.block_until_ready(layernorm(x16, gamma.astype(jnp.bfloat16)))
    x16f = x16.astype(jnp.float32)
    mean16 = jnp.mean(x16f, axis=1, keepdims=True)
    var16 = jnp.var(x16f, axis=1, keepdims=True)
    ref16 = (x16f - mean16) / jnp.sqrt(var16 + 1e-5) * gamma
    assert out16.dtype == jnp.bfloat16
    assert jnp.allclose(out16.astype(jnp.float32), ref16, atol=1e-2, rtol=1e-2), \
        "bf16 mismatch vs reference"

    # Non-128-divisible spatial size (partial last block) sanity check.
    x_odd = jax.random.normal(jax.random.PRNGKey(1), (2, 4, 5, 6, 7), jnp.float32)
    out_odd = jax.block_until_ready(layernorm(x_odd, gamma))
    mean_o = jnp.mean(x_odd, axis=1, keepdims=True)
    var_o = jnp.var(x_odd, axis=1, keepdims=True)
    ref_o = (x_odd - mean_o) / jnp.sqrt(var_o + 1e-5) * gamma
    assert jnp.allclose(out_odd, ref_o, atol=1e-5, rtol=1e-5), "odd-S mismatch"

    print("KERNEL_OK")
</pallas_src>

<mosaic_0001>
module attributes {stable_mosaic.version = 11 : i64} {
  func.func @_layernorm_kernel(%arg0: i32, %arg1: i32, %arg2: memref<1x4x512xf32, #tpu.memory_space<vmem>>, %arg3: memref<1x4x1xf32, #tpu.memory_space<vmem>>, %arg4: memref<1x4x512xf32, #tpu.memory_space<vmem>>) attributes {dimension_semantics = [#tpu.dimension_semantics<parallel>, #tpu.dimension_semantics<parallel>], iteration_bounds = array<i64: 2, 1>, scalar_prefetch = 0 : i64, scratch_operands = 0 : i64, tpu.core_type = #tpu.core_type<tc>, window_params = [{transform_indices = @transform_0, window_bounds = array<i64: 1, 4, 512>}, {pipeline_mode = #tpu.pipeline_mode<synchronous>, transform_indices = @transform_1, window_bounds = array<i64: 1, 4, 1>}, {transform_indices = @transform_2, window_bounds = array<i64: 1, 4, 512>}]} {
    %c0 = arith.constant 0 : index
    %c0_0 = arith.constant 0 : index
    %c0_1 = arith.constant 0 : index
    %0 = vector.load %arg2[%c0, %c0_0, %c0_1] : memref<1x4x512xf32, #tpu.memory_space<vmem>>, vector<1x4x512xf32>
    %cst = arith.constant dense<0.000000e+00> : vector<1x512xf32>
    %1 = vector.multi_reduction <add>, %0, %cst [1] : vector<1x4x512xf32> to vector<1x512xf32>
    %2 = vector.shape_cast %1 : vector<1x512xf32> to vector<1x1x512xf32>
    %cst_2 = arith.constant 4.000000e+00 : f32
    %3 = vector.broadcast %cst_2 : f32 to vector<1x1x512xf32>
    %4 = arith.divf %2, %3 : vector<1x1x512xf32>
    %5 = vector.broadcast %4 : vector<1x1x512xf32> to vector<1x4x512xf32>
    %6 = arith.subf %0, %5 : vector<1x4x512xf32>
    %7 = arith.mulf %6, %6 : vector<1x4x512xf32>
    %cst_3 = arith.constant dense<0.000000e+00> : vector<1x512xf32>
    %8 = vector.multi_reduction <add>, %7, %cst_3 [1] : vector<1x4x512xf32> to vector<1x512xf32>
    %9 = vector.shape_cast %8 : vector<1x512xf32> to vector<1x1x512xf32>
    %cst_4 = arith.constant 4.000000e+00 : f32
    %10 = vector.broadcast %cst_4 : f32 to vector<1x1x512xf32>
    %11 = arith.divf %9, %10 : vector<1x1x512xf32>
    %cst_5 = arith.constant 9.99999974E-6 : f32
    %12 = vector.broadcast %cst_5 : f32 to vector<1x1x512xf32>
    %13 = arith.addf %11, %12 : vector<1x1x512xf32>
    %14 = math.rsqrt %13 : vector<1x1x512xf32>
    %15 = vector.broadcast %14 : vector<1x1x512xf32> to vector<1x4x512xf32>
    %16 = arith.mulf %6, %15 : vector<1x4x512xf32>
    %c0_6 = arith.constant 0 : index
    %c0_7 = arith.constant 0 : index
    %c0_8 = arith.constant 0 : index
    %17 = vector.load %arg3[%c0_6, %c0_7, %c0_8] : memref<1x4x1xf32, #tpu.memory_space<vmem>>, vector<1x4x1xf32>
    %18 = vector.broadcast %17 : vector<1x4x1xf32> to vector<1x4x512xf32>
    %19 = arith.mulf %16, %18 : vector<1x4x512xf32>
    %c0_9 = arith.constant 0 : index
    %c0_10 = arith.constant 0 : index
    %c0_11 = arith.constant 0 : index
    %20 = vector.load %arg4[%c0_9, %c0_10, %c0_11] : memref<1x4x512xf32, #tpu.memory_space<vmem>>, vector<1x4x512xf32>
    tpu.vector_store %arg4[%c0_9, %c0_10, %c0_11], %19 {strides = array<i32>} : memref<1x4x512xf32, #tpu.memory_space<vmem>>, vector<1x4x512xf32>,
    return
  }
  func.func @transform_0(%arg0: i32, %arg1: i32) -> (i32, i32, i32) {
    %c0_i32 = arith.constant 0 : i32
    %c0_i32_0 = arith.constant 0 : i32
    return %arg0, %c0_i32, %arg1 : i32, i32, i32
  }
  func.func @transform_1(%arg0: i32, %arg1: i32) -> (i32, i32, i32) {
    %c0_i32 = arith.constant 0 : i32
    %c0_i32_0 = arith.constant 0 : i32
    %c0_i32_1 = arith.constant 0 : i32
    %c0_i32_2 = arith.constant 0 : i32
    return %c0_i32, %c0_i32_0, %c0_i32_1 : i32, i32, i32
  }
  func.func @transform_2(%arg0: i32, %arg1: i32) -> (i32, i32, i32) {
    %c0_i32 = arith.constant 0 : i32
    %c0_i32_0 = arith.constant 0 : i32
    return %arg0, %c0_i32, %arg1 : i32, i32, i32
  }
}

</mosaic_0001>

<llo_original>
// kernel: tpu_custom_call.1
$region0: #{tpu_custom_call.1}
  #allocation0 [shape = 'u32[]', space=smem, size = 0x4, offset = 0x4, fixed_abs, tag = 'smem constant byte address 0x4 - core index']
  #allocation1 [shape = 'u32[72,128]{1,0:T(1,128)}', space=vmem, size = 0x9000, scoped, tag = 'internal scratch']
  %s0 = inlined_call_operand.hbm [shape: f32[2,4,512], index: 0, kind: input, shape index: {}]
  %s1 = inlined_call_operand.vmem [shape: f32[1,4,1], index: 1, kind: input, shape index: {}]
  %s2 = inlined_call_operand.hbm [shape: f32[2,4,512], index: 2, kind: output, shape index: {}]
  %s3 = sld [smem:[#allocation0]]
  $region45: #{tpu_custom_call.1} parent=0
    _
  %s5 = ssub.s32 1, %s3
  %s6 = scalar_select 0, %s5, %s3
  $region1: #{tpu_custom_call.1} parent=0
    #allocation2 [shape = 'u8[16384]{0}', space=vmem, size = 0x4000, scoped, tag = 'input window, operand 0']
    #allocation3 [shape = 's32[2]{0}', space=sflag, size = 0x8, scoped, tag = 'scoped memory for tpu_custom_call.1']
    #allocation4 [shape = 's32[2]{0}', space=sflag, size = 0x8, scoped, tag = 'scoped memory for tpu_custom_call.1']
    #allocation5 [shape = 'u8[16384]{0}', space=vmem, size = 0x4000, scoped, tag = 'output window, operand 0']
    %7 = vsyncpa [#allocation3], 0
    %s8 = scalar_lea.sflag [#allocation3], 1
    %9 = vsyncpa %s8, 0
    %10 = vsyncpa [#allocation4], 0
    %s11 = scalar_lea.sflag [#allocation4], 1
    %12 = vsyncpa %s11, 0
    loop: start=0, step=1, limit=4
    $region2: #{tpu_custom_call.1} parent=1 // loop_pre_header
      _
    $region3: #{tpu_custom_call.1} parent=1 // loop_header
      %s14 = sphi 0, %s18
      %p15 = scmp.ge.s32.totalorder %s14, 4
      %s21 = sphi 0, %s33
      %s22 = sphi 0, %s29
      %s23 = sphi 0, %s21
      %s24 = sphi 0, %s22
      %s25 = sphi 0, %s23
      %s26 = sphi 0, %s24
      %s38 = sphi 0, %s40
      %s41 = sphi 0, %s38
      %s42 = sphi 0, %s41
      %s58 = sphi 0, %s42
      %s62 = sphi 0, %s62
      %s64 = sphi 0, %s62
      %s65 = sphi 0, %s64
      %s79 = sphi 0, %s65
      %s87 = sphi 0, %s89
      %s90 = sphi 0, %s87
      %s91 = sphi 0, %s90
      %s107 = sphi 0, %s91
    $region4: #{tpu_custom_call.1} parent=1 // loop_header_branch
      %17 = sbr.rel (%p15) target = $region8
    $region5: #{tpu_custom_call.1} parent=1 // loop_body
      %s19 = ssub.s32 %s14, 1
      %s20 = ssub.s32 %s14, 2
      %s27 = sadd.s32 1, %s22
      %p28 = scmp.ge.s32.totalorder %s27, 1
      %s29 = scalar_select %p28, 0, %s27
      %s30 = sadd.s32 1, %s21
      %s31 = scalar_select %p28, %s30, %s21
      %p32 = scmp.ge.s32.totalorder %s31, 2
      %s33 = scalar_select %p32, 0, %s31
      %s34 = ssub.s32 %s21, %s33
      %s35 = ssub.s32 %s22, %s29
      %s36 = sor.u32 %s34, %s35
      %p37 = scmp.eq.s32.totalorder %s36, 0
      %s39 = sadd.s32 %s38, 1
      %s40 = scalar_select %p37, %s38, %s39
      %p43 = pneg %p37
      %p44 = scmp.eq.s32.totalorder %s14, 1
      %p45 = por %p43, %p44
      %p46 = scmp.ne.s32.totalorder %s38, %s41
      %p47 = scmp.eq.s32.totalorder %s14, 0
      %p48 = por %p46, %p47
      %p49 = scmp.ne.s32.totalorder %s38, %s41
      %p50 = scmp.eq.s32.totalorder %s19, 1
      %p51 = por %p49, %p50
      %p52 = scmp.ne.s32.totalorder %s41, %s42
      %p53 = scmp.eq.s32.totalorder %s19, 0
      %p54 = por %p52, %p53
      %p55 = scmp.ne.s32.totalorder %s41, %s42
      %p56 = scmp.eq.s32.totalorder %s20, 1
      %p57 = por %p55, %p56
      %p59 = scmp.ne.s32.totalorder %s42, %s58
      %p60 = scmp.eq.s32.totalorder %s20, 0
      %p61 = por %p59, %p60
      %s63 = sadd.s32 %s62, 1
      %p66 = scmp.eq.s32.totalorder %s14, 1
      %p67 = scmp.ne.s32.totalorder %s62, %s64
      %p68 = scmp.eq.s32.totalorder %s14, 0
      %p69 = por %p67, %p68
      %p70 = scmp.ne.s32.totalorder %s62, %s64
      %p71 = scmp.eq.s32.totalorder %s19, 1
      %p72 = por %p70, %p71
      %p73 = scmp.ne.s32.totalorder %s64, %s65
      %p74 = scmp.eq.s32.totalorder %s19, 0
      %p75 = por %p73, %p74
      %p76 = scmp.ne.s32.totalorder %s64, %s65
      %p77 = scmp.eq.s32.totalorder %s20, 1
      %p78 = por %p76, %p77
      %p80 = scmp.ne.s32.totalorder %s65, %s79
      %p81 = scmp.eq.s32.totalorder %s20, 0
      %p82 = por %p80, %p81
      %s83 = ssub.s32 %s21, %s33
      %s84 = ssub.s32 %s22, %s29
      %s85 = sor.u32 %s83, %s84
      %p86 = scmp.eq.s32.totalorder %s85, 0
      %s88 = sadd.s32 %s87, 1
      %s89 = scalar_select %p86, %s87, %s88
      %p92 = pneg %p86
      %p93 = scmp.eq.s32.totalorder %s14, 1
      %p94 = por %p92, %p93
      %p95 = scmp.ne.s32.totalorder %s87, %s90
      %p96 = scmp.eq.s32.totalorder %s14, 0
      %p97 = por %p95, %p96
      %p98 = scmp.ne.s32.totalorder %s87, %s90
      %p99 = scmp.eq.s32.totalorder %s19, 1
      %p100 = por %p98, %p99
      %p101 = scmp.ne.s32.totalorder %s90, %s91
      %p102 = scmp.eq.s32.totalorder %s19, 0
      %p103 = por %p101, %p102
      %p104 = scmp.ne.s32.totalorder %s90, %s91
      %p105 = scmp.eq.s32.totalorder %s20, 1
      %p106 = por %p104, %p105
      %p108 = scmp.ne.s32.totalorder %s91, %s107
      %p109 = scmp.eq.s32.totalorder %s20, 0
      %p110 = por %p108, %p109
      %p111 = scmp.le.s32.totalorder 1, %s14
      %p112 = scmp.lt.s32.totalorder %s14, 3
      %p113 = pnand %p111, %p112
      %p114 = pneg %p113
      // Predicated region
      $region9: #{tpu_custom_call.1} parent=5 // pred_check
        _
      $region10: #{tpu_custom_call.1} parent=5 // pred_check_branch
        %116 = sbr.rel (%p113) target = $region12
      $region11: #{tpu_custom_call.1} parent=5 // pred_region
        %s117 = ssub.s32 %s14, 1
        // Predicated region
        $region13: #{tpu_custom_call.1} parent=11 // pred_check
          %p118 = pneg %p75
        $region14: #{tpu_custom_call.1} parent=11 // pred_check_branch
          %120 = sbr.rel (%p118) target = $region16
        $region15: #{tpu_custom_call.1} parent=11 // pred_region
          _
        $region16: #{tpu_custom_call.1} parent=11 // pred_fallthru
          _
      $region12: #{tpu_custom_call.1} parent=5 // pred_fallthru
        _
      %p121 = scmp.lt.s32.totalorder %s14, 2
      // Predicated region
      $region17: #{tpu_custom_call.1} parent=5 // pred_check
        %p122 = pneg %p121
      $region18: #{tpu_custom_call.1} parent=5 // pred_check_branch
        %124 = sbr.rel (%p122) target = $region20
      $region19: #{tpu_custom_call.1} parent=5 // pred_region
        // Predicated region
        $region21: #{tpu_custom_call.1} parent=19 // pred_check
          %p125 = pneg %p48
        $region22: #{tpu_custom_call.1} parent=19 // pred_check_branch
          %127 = sbr.rel (%p125) target = $region24
        $region23: #{tpu_custom_call.1} parent=19 // pred_region
          %s128 = sand.u32 %s38, 1
          %s129 = scalar_lea.sflag [#allocation3], %s128
          %s130 = sand.u32 %s38, 1
          %s131 = smul.addr %s130, 16
          %s132 = scalar_lea.vmem [#allocation2], %s131
          %s133 = smul.u32 4, %s22
          %135 = vsyncadd %s129, 0
          %s136 = smul.addr %s21, 4
          %s137 = sadd.s32 %s133, %s136
          %s138 = smul.addr %s137, 4
          %s139 = scalar_lea.hbm %s0, %s138
          %s141 = sshll.u32 %s139, 4
          %s142 = int_to_ptr.hbm [resolvable:$true] %s141
          %s143 = sshll.u32 %s132, 4
          %s144 = int_to_ptr.vmem [resolvable:$true] %s143
          %146 = dma.hbm_to_vmem [thread:$0]  %s142, 256, %s144, %s129
        $region24: #{tpu_custom_call.1} parent=19 // pred_fallthru
          _
      $region20: #{tpu_custom_call.1} parent=5 // pred_fallthru
        _
      %p147 = scmp.le.s32.totalorder 1, %s14
      %p148 = scmp.lt.s32.totalorder %s14, 3
      %p149 = pnand %p147, %p148
      %p150 = pneg %p149
      // Predicated region
      $region25: #{tpu_custom_call.1} parent=5 // pred_check
        _
      $region26: #{tpu_custom_call.1} parent=5 // pred_check_branch
        %152 = sbr.rel (%p149) target = $region28
      $region27: #{tpu_custom_call.1} parent=5 // pred_region
        %s153 = ssub.s32 %s14, 1
        %s154 = sand.u32 %s41, 1
        %s155 = scalar_lea.sflag [#allocation3], %s154
        %s156 = sand.u32 %s41, 1
        %s157 = smul.addr %s156, 16
        %s158 = scalar_lea.vmem [#allocation2], %s157
        // Predicated region
        $region29: #{tpu_custom_call.1} parent=27 // pred_check
          %p159 = pneg %p54
        $region30: #{tpu_custom_call.1} parent=27 // pred_check_branch
          %161 = sbr.rel (%p159) target = $region32
        $region31: #{tpu_custom_call.1} parent=27 // pred_region
          %163 = dma.done %s155, 256
        $region32: #{tpu_custom_call.1} parent=27 // pred_fallthru
          _
        %s164 = sand.u32 %s41, 1
        %s165 = scalar_lea.sflag [#allocation3], %s164
        %s166 = sand.u32 %s41, 1
        %s167 = smul.addr %s166, 16
        %s168 = scalar_lea.vmem [#allocation2], %s167
        %p169 = pneg %p54
        %p170 = pneg %p51
        %p171 = pneg %p75
        %p172 = pneg %p72
        %p173 = pneg %p103
        %p174 = pneg %p100
        %s175 = sand.u32 %s90, 1
        %s176 = scalar_lea.sflag [#allocation4], %s175
        %s177 = sand.u32 %s90, 1
        %s178 = smul.addr %s177, 16
        %s179 = scalar_lea.vmem [#allocation5], %s178
        %s180 = smul.u32 4, %s24
        %s181 = smul.u32 4, %s24
        %v182 = vld [vmem:[%s158] sm:$0xff]
        %v183 = vld [vmem:[%s158 + $0x8] sm:$0xff]
        %186 = vst [vmem:[#allocation1] ss:$2 sm:$0xff] %v182
        %s187 = scalar_lea.vmem [#allocation1], 16
        %188 = vst [vmem:[%s187] ss:$2 sm:$0xff] %v183
        %v189 = vld.sshfl [vmem:[#allocation1] sm:$0xff pattern:$0x75316420]
        %v190 = vld.sshfl [vmem:[#allocation1 + $0x8] sm:$0xff pattern:$0x75316420]
        %v191 = vld.sshfl [vmem:[#allocation1 + $0x10] sm:$0xff pattern:$0x75316420]
        %v192 = vld.sshfl [vmem:[#allocation1 + $0x18] sm:$0xff pattern:$0x75316420]
        %vm197 = vcmask 1043456
        %v198 = vsel %vm197, %v189, 0.0
        %v199 = vrot.slane %v198, 4
        %v200 = vadd.f32 %v198, %v199
        %v201 = vrot.slane %v200, 2
        %v202 = vadd.f32 %v200, %v201
        %v203 = vrot.slane %v202, 1
        %v204 = vadd.f32 %v202, %v203
        %v205 = vsel %vm197, %v190, 0.0
        %v206 = vrot.slane %v205, 4
        %v207 = vadd.f32 %v205, %v206
        %v208 = vrot.slane %v207, 2
        %v209 = vadd.f32 %v207, %v208
        %v210 = vrot.slane %v209, 1
        %v211 = vadd.f32 %v209, %v210
        %v212 = vsel %vm197, %v191, 0.0
        %v213 = vrot.slane %v212, 4
        %v214 = vadd.f32 %v212, %v213
        %v215 = vrot.slane %v214, 2
        %v216 = vadd.f32 %v214, %v215
        %v217 = vrot.slane %v216, 1
        %v218 = vadd.f32 %v216, %v217
        %v219 = vsel %vm197, %v192, 0.0
        %v220 = vrot.slane %v219, 4
        %v221 = vadd.f32 %v219, %v220
        %v222 = vrot.slane %v221, 2
        %v223 = vadd.f32 %v221, %v222
        %v224 = vrot.slane %v223, 1
        %v225 = vadd.f32 %v223, %v224
        %v226 = vrcp.pop 4.0
        %v227 = vmul.f32 4.0, %v226
        %v228 = vsub.f32 1.0, %v227
        %v229 = vmul.f32 %v226, %v228
        %v230 = vadd.f32 %v226, %v229
        %vm231 = vweird.f32 %v226
        %v232 = vsel %vm231, %v226, %v230
        %v233 = vmul.f32 %v204, %v232
        %v234 = vmul.f32 %v211, %v232
        %v235 = vmul.f32 %v218, %v232
        %v236 = vmul.f32 %v225, %v232
        %v241 = vrot.slane %v234, 4
        %v242 = vrot.slane %v236, 4
        %v243 = vsel %vm197, %v233, %v241
        %v244 = vsel %vm197, %v235, %v242
        %v247 = vsub.f32 %v182, %v243
        %v248 = vsub.f32 %v183, %v244
        %v249 = vmul.f32 %v247, %v247
        %v250 = vmul.f32 %v248, %v248
        %253 = vst [vmem:[#allocation1] ss:$2 sm:$0xff] %v249
        %s254 = scalar_lea.vmem [#allocation1], 16
        %255 = vst [vmem:[%s254] ss:$2 sm:$0xff] %v250
        %v256 = vld.sshfl [vmem:[#allocation1] sm:$0xff pattern:$0x75316420]
        %v257 = vld.sshfl [vmem:[#allocation1 + $0x8] sm:$0xff pattern:$0x75316420]
        %v258 = vld.sshfl [vmem:[#allocation1 + $0x10] sm:$0xff pattern:$0x75316420]
        %v259 = vld.sshfl [vmem:[#allocation1 + $0x18] sm:$0xff pattern:$0x75316420]
        %v264 = vsel %vm197, %v256, 0.0
        %v265 = vrot.slane %v264, 4
        %v266 = vadd.f32 %v264, %v265
        %v267 = vrot.slane %v266, 2
        %v268 = vadd.f32 %v266, %v267
        %v269 = vrot.slane %v268, 1
        %v270 = vadd.f32 %v268, %v269
        %v271 = vsel %vm197, %v257, 0.0
        %v272 = vrot.slane %v271, 4
        %v273 = vadd.f32 %v271, %v272
        %v274 = vrot.slane %v273, 2
        %v275 = vadd.f32 %v273, %v274
        %v276 = vrot.slane %v275, 1
        %v277 = vadd.f32 %v275, %v276
        %v278 = vsel %vm197, %v258, 0.0
        %v279 = vrot.slane %v278, 4
        %v280 = vadd.f32 %v278, %v279
        %v281 = vrot.slane %v280, 2
        %v282 = vadd.f32 %v280, %v281
        %v283 = vrot.slane %v282, 1
        %v284 = vadd.f32 %v282, %v283
        %v285 = vsel %vm197, %v259, 0.0
        %v286 = vrot.slane %v285, 4
        %v287 = vadd.f32 %v285, %v286
        %v288 = vrot.slane %v287, 2
        %v289 = vadd.f32 %v287, %v288
        %v290 = vrot.slane %v289, 1
        %v291 = vadd.f32 %v289, %v290
        %v292 = vmul.f32 %v270, %v232
        %v293 = vmul.f32 %v277, %v232
        %v294 = vmul.f32 %v284, %v232
        %v295 = vmul.f32 %v291, %v232
        %v296 = vadd.f32 %v292, 1e-05
        %v297 = vadd.f32 %v293, 1e-05
        %v298 = vadd.f32 %v294, 1e-05
        %v299 = vadd.f32 %v295, 1e-05
        %v300 = vrsqrt.pop %v296
        %v301 = vmul.f32 %v300, %v296
        %v302 = vmul.f32 %v301, %v300
        %v303 = vmul.f32 0.5, %v302
        %v304 = vsub.f32 1.5, %v303
        %v305 = vmul.f32 %v300, %v304
        %vm306 = vweird.f32 %v296
        %vm307 = vweird.f32 %v300
        %vm308 = vmor %vm306, %vm307
        %v309 = vsel %vm308, %v300, %v305
        %v310 = vrsqrt.pop %v297
        %v311 = vmul.f32 %v310, %v297
        %v312 = vmul.f32 %v311, %v310
        %v313 = vmul.f32 0.5, %v312
        %v314 = vsub.f32 1.5, %v313
        %v315 = vmul.f32 %v310, %v314
        %vm316 = vweird.f32 %v297
        %vm317 = vweird.f32 %v310
        %vm318 = vmor %vm316, %vm317
        %v319 = vsel %vm318, %v310, %v315
        %v320 = vrsqrt.pop %v298
        %v321 = vmul.f32 %v320, %v298
        %v322 = vmul.f32 %v321, %v320
        %v323 = vmul.f32 0.5, %v322
        %v324 = vsub.f32 1.5, %v323
        %v325 = vmul.f32 %v320, %v324
        %vm326 = vweird.f32 %v298
        %vm327 = vweird.f32 %v320
        %vm328 = vmor %vm326, %vm327
        %v329 = vsel %vm328, %v320, %v325
        %v330 = vrsqrt.pop %v299
        %v331 = vmul.f32 %v330, %v299
        %v332 = vmul.f32 %v331, %v330
        %v333 = vmul.f32 0.5, %v332
        %v334 = vsub.f32 1.5, %v333
        %v335 = vmul.f32 %v330, %v334
        %vm336 = vweird.f32 %v299
        %vm337 = vweird.f32 %v330
        %vm338 = vmor %vm336, %vm337
        %v339 = vsel %vm338, %v330, %v335
        %v344 = vrot.slane %v319, 4
        %v345 = vrot.slane %v339, 4
        %v346 = vsel %vm197, %v309, %v344
        %v347 = vsel %vm197, %v329, %v345
        %v350 = vmul.f32 %v247, %v346
        %v351 = vmul.f32 %v248, %v347
        %v352 = vld [vmem:[%s1] sm:$0xf]
        %354 = vset.pattern.permute.xlu0 0
        %355 = vperm.xlu0 %354, %v352
        %v356 = vpop.permute.xlu0 %355
        %v358 = vunpack.c.l.s4 839922192
        %v359 = vunpack.c.0.s8 %v358
        %v360 = vperm.slane %v356, %v359
        %v362 = vmul.f32 %v350, %v360
        %v363 = vmul.f32 %v351, %v360
        %364 = vst [vmem:[%s179] sm:$0xff] %v362
        %365 = vst [vmem:[%s179 + $0x8] sm:$0xff] %v363
        %s366 = sand.u32 %s90, 1
        %s367 = scalar_lea.sflag [#allocation4], %s366
        %s368 = sand.u32 %s90, 1
        %s369 = smul.addr %s368, 16
        %s370 = scalar_lea.vmem [#allocation5], %s369
        // Predicated region
        $region33: #{tpu_custom_call.1} parent=27 // pred_check
          %p371 = pneg %p100
        $region34: #{tpu_custom_call.1} parent=27 // pred_check_branch
          %373 = sbr.rel (%p371) target = $region36
        $region35: #{tpu_custom_call.1} parent=27 // pred_region
          %s374 = smul.u32 4, %s24
          %376 = vsyncadd %s367, 0
          %s377 = smul.addr %s23, 4
          %s378 = sadd.s32 %s374, %s377
          %s379 = smul.addr %s378, 4
          %s380 = scalar_lea.hbm %s2, %s379
          %s382 = sshll.u32 %s370, 4
          %s383 = int_to_ptr.vmem [resolvable:$true] %s382
          %s384 = sshll.u32 %s380, 4
          %s385 = int_to_ptr.hbm [resolvable:$true] %s384
          %387 = dma.vmem_to_hbm [thread:$0]  %s383, 256, %s385, %s367
        $region36: #{tpu_custom_call.1} parent=27 // pred_fallthru
          _
      $region28: #{tpu_custom_call.1} parent=5 // pred_fallthru
        _
      %p388 = scmp.le.s32.totalorder 2, %s14
      // Predicated region
      $region37: #{tpu_custom_call.1} parent=5 // pred_check
        %p389 = pneg %p388
      $region38: #{tpu_custom_call.1} parent=5 // pred_check_branch
        %391 = sbr.rel (%p389) target = $region40
      $region39: #{tpu_custom_call.1} parent=5 // pred_region
        %s392 = ssub.s32 %s14, 2
        // Predicated region
        $region41: #{tpu_custom_call.1} parent=39 // pred_check
          %p393 = pneg %p106
        $region42: #{tpu_custom_call.1} parent=39 // pred_check_branch
          %395 = sbr.rel (%p393) target = $region44
        $region43: #{tpu_custom_call.1} parent=39 // pred_region
          %s396 = sand.u32 %s91, 1
          %s397 = scalar_lea.sflag [#allocation4], %s396
          %s398 = sand.u32 %s91, 1
          %s399 = smul.addr %s398, 16
          %s400 = scalar_lea.vmem [#allocation5], %s399
          %402 = dma.done %s397, 256
        $region44: #{tpu_custom_call.1} parent=39 // pred_fallthru
          _
      $region40: #{tpu_custom_call.1} parent=5 // pred_fallthru
        _
    $region6: #{tpu_custom_call.1} parent=1 // loop_footer
      %s18 = sadd.s32 1, %s14
    $region7: #{tpu_custom_call.1} parent=1 // loop_footer_branch
      %13 = sbr.rel target = $region3
    $region8: #{tpu_custom_call.1} parent=1 // loop_exit
      _
    %403 = vsyncpa [#allocation3], 1
    %s404 = scalar_lea.sflag [#allocation3], 1
    %405 = vsyncpa %s404, 1
    %406 = vsyncpa [#allocation4], 1
    %s407 = scalar_lea.sflag [#allocation4], 1
    %408 = vsyncpa %s407, 1

</llo_original>
